<compile_context>
chip_gen: v5e
topology: v5e:2x2
jax: 0.10.0
libtpu: 0.0.40
codegen_flags: <defaults>
</compile_context>

<pallas_src>
import functools

import jax
import jax.numpy as jnp
from jax.experimental import pallas as pl
from jax.experimental.pallas import tpu as pltpu


# ----------------------------------------------------------------------------
# Fused Teacher kernel (per tile of rows, everything stays in VMEM):
#   gate    = sigmoid(relu(prof @ sW1 + sb1) @ sW2 + sb2)
#   prof2   = prof * gate                       -> output 2
#   h       = relu(seq @ W1_seq + prof2 @ W1_prof + b1)   (split-W1, no concat)
#   logits  = h @ W2 + b2                       -> output 1
# ----------------------------------------------------------------------------
def _teacher_kernel(seq_ref, prof_ref,
                    sw1_ref, sb1_ref, sw2_ref, sb2_ref,
                    w1s_ref, w1p_ref, b1_ref, w2_ref, b2_ref,
                    logits_ref, prof_out_ref):
    prof = prof_ref[...].astype(jnp.float32)                         # (T, P)
    seq = seq_ref[...].astype(jnp.float32)                           # (T, D)

    # --- StretchNet gate (gate itself is never written to HBM) ---
    h = jnp.dot(prof, sw1_ref[...], preferred_element_type=jnp.float32)
    h = jnp.maximum(h + sb1_ref[...], 0.0)                           # (T, H1)
    g = jnp.dot(h, sw2_ref[...], preferred_element_type=jnp.float32)
    g = jax.nn.sigmoid(g + sb2_ref[...])                             # (T, P)
    prof2 = prof * g
    prof_out_ref[...] = prof2.astype(prof_out_ref.dtype)

    # --- SSENet (split first-layer weight: no lane concatenate) ---
    h2 = (jnp.dot(seq, w1s_ref[...], preferred_element_type=jnp.float32)
          + jnp.dot(prof2, w1p_ref[...], preferred_element_type=jnp.float32)
          + b1_ref[...])                                             # (T, H2)
    h2 = jnp.maximum(h2, 0.0)
    o = jnp.dot(h2, w2_ref[...], preferred_element_type=jnp.float32) # (T, L)
    logits_ref[...] = (o + b2_ref[...]).astype(logits_ref.dtype)


# ----------------------------------------------------------------------------
# Teacher wrapper
# ----------------------------------------------------------------------------
def init_teacher_params(key, *, input_dim, profile_dim, hidden, num_labels):
    ks = jax.random.split(key, 4)
    scale = 0.1
    stretch = (
        scale * jax.random.normal(ks[0], (profile_dim, hidden), jnp.float32),
        jnp.zeros((1, hidden), jnp.float32),
        scale * jax.random.normal(ks[1], (hidden, profile_dim), jnp.float32),
        jnp.zeros((1, profile_dim), jnp.float32),
    )
    sse = (
        scale * jax.random.normal(ks[2], (input_dim + profile_dim, hidden),
                                  jnp.float32),
        jnp.zeros((1, hidden), jnp.float32),
        scale * jax.random.normal(ks[3], (hidden, num_labels), jnp.float32),
        jnp.zeros((1, num_labels), jnp.float32),
    )
    return {"stretch": stretch, "sse": sse}


def _choose_tile(n_rows, tile_rows):
    """Row tile: multiple of 8, capped at tile_rows, keeps >=4 grid steps
    when the row count allows it (v7x megacore sharding)."""
    r8 = ((n_rows + 7) // 8) * 8
    quarter = max(8, (r8 // 4) // 8 * 8)
    return max(8, min(tile_rows, r8, quarter))


@functools.partial(jax.jit, static_argnames=("tile_rows",))
def teacher_forward(sequence, profile, params, *, tile_rows=512):
    """sequence: (B, S, input_dim); profile: (B, S, profile_dim), feature-last.

    Returns (logits (B, S, num_labels), stretched_profile (B, S, profile_dim)),
    mirroring Teacher.forward -> (ssenet(sequence, profile'), profile').
    """
    B, S, D = sequence.shape
    _, _, P = profile.shape
    R = B * S
    seq_2d = sequence.reshape(R, D)
    prof_2d = profile.reshape(R, P)

    sw1, sb1, sw2, sb2 = params["stretch"]
    w1, b1, w2, b2 = params["sse"]
    H1 = sw1.shape[1]
    H2 = w1.shape[1]
    L = w2.shape[1]
    # Split SSENet's first-layer weight so the kernel avoids a lane concat.
    w1_seq = w1[:D]            # (D, H2)
    w1_prof = w1[D:]           # (P, H2)

    tile = _choose_tile(R, tile_rows)
    r_pad = pl.cdiv(R, tile) * tile
    if r_pad != R:
        pad = r_pad - R
        seq_2d = jnp.pad(seq_2d, ((0, pad), (0, 0)))
        prof_2d = jnp.pad(prof_2d, ((0, pad), (0, 0)))
    grid = (r_pad // tile,)

    wfull = lambda i: (0, 0)   # resident weights / biases
    row = lambda i: (i, 0)

    logits_2d, prof2_2d = pl.pallas_call(
        _teacher_kernel,
        out_shape=(jax.ShapeDtypeStruct((r_pad, L), jnp.float32),
                   jax.ShapeDtypeStruct((r_pad, P), jnp.float32)),
        grid_spec=pltpu.PrefetchScalarGridSpec(
            num_scalar_prefetch=0,
            grid=grid,
            in_specs=[
                pl.BlockSpec((tile, D), row),     # sequence rows
                pl.BlockSpec((tile, P), row),     # profile rows
                pl.BlockSpec((P, H1), wfull),     # stretch W1
                pl.BlockSpec((1, H1), wfull),     # stretch b1
                pl.BlockSpec((H1, P), wfull),     # stretch W2
                pl.BlockSpec((1, P), wfull),      # stretch b2
                pl.BlockSpec((D, H2), wfull),     # sse W1 (sequence half)
                pl.BlockSpec((P, H2), wfull),     # sse W1 (profile half)
                pl.BlockSpec((1, H2), wfull),     # sse b1
                pl.BlockSpec((H2, L), wfull),     # sse W2
                pl.BlockSpec((1, L), wfull),      # sse b2
            ],
            out_specs=[
                pl.BlockSpec((tile, L), row),
                pl.BlockSpec((tile, P), row),
            ],
        ),
        compiler_params=pltpu.CompilerParams(
            dimension_semantics=("parallel",)),
    )(seq_2d, prof_2d, sw1, sb1, sw2, sb2, w1_seq, w1_prof, b1, w2, b2)

    logits_2d = logits_2d[:R]
    prof2_2d = prof2_2d[:R]
    return logits_2d.reshape(B, S, L), prof2_2d.reshape(B, S, P)


# ----------------------------------------------------------------------------
# Pure-JAX reference for correctness check
# ----------------------------------------------------------------------------
def teacher_ref(sequence, profile, params):
    w1, b1, w2, b2 = params["stretch"]
    h = jnp.maximum(profile @ w1 + b1[0], 0.0)
    g = jax.nn.sigmoid(h @ w2 + b2[0])
    prof2 = profile * g
    w1, b1, w2, b2 = params["sse"]
    x = jnp.concatenate([sequence, prof2], axis=-1)
    h = jnp.maximum(x @ w1 + b1[0], 0.0)
    logits = h @ w2 + b2[0]
    return logits, prof2


if __name__ == "__main__":
    INPUT_DIM = 8         # one-hot sequence features
    PROFILE_DIM = 8       # profile features
    HIDDEN = 32
    NUM_LABELS = 4        # config.num_labels

    key = jax.random.PRNGKey(0)
    k_seq, k_prof, k_par, k_seq2, k_prof2 = jax.random.split(key, 5)
    params = init_teacher_params(
        k_par, input_dim=INPUT_DIM, profile_dim=PROFILE_DIM,
        hidden=HIDDEN, num_labels=NUM_LABELS)

    # Case 1: rows divisible by the tile.
    B, S = 2, 16
    sequence = jax.random.normal(k_seq, (B, S, INPUT_DIM), jnp.float32)
    profile = jax.random.normal(k_prof, (B, S, PROFILE_DIM), jnp.float32)
    logits, prof_out = teacher_forward(sequence, profile, params)
    jax.block_until_ready((logits, prof_out))
    ref_logits, ref_prof = teacher_ref(sequence, profile, params)
    assert logits.shape == (B, S, NUM_LABELS)
    assert prof_out.shape == (B, S, PROFILE_DIM)
    assert jnp.allclose(logits, ref_logits, atol=1e-4, rtol=1e-4)
    assert jnp.allclose(prof_out, ref_prof, atol=1e-4, rtol=1e-4)

    # Case 2: row count not a multiple of the tile (exercises tail padding).
    B2, S2 = 3, 10
    sequence2 = jax.random.normal(k_seq2, (B2, S2, INPUT_DIM), jnp.float32)
    profile2 = jax.random.normal(k_prof2, (B2, S2, PROFILE_DIM), jnp.float32)
    logits2, prof_out2 = teacher_forward(sequence2, profile2, params)
    jax.block_until_ready((logits2, prof_out2))
    ref_logits2, ref_prof2 = teacher_ref(sequence2, profile2, params)
    assert logits2.shape == (B2, S2, NUM_LABELS)
    assert prof_out2.shape == (B2, S2, PROFILE_DIM)
    assert jnp.allclose(logits2, ref_logits2, atol=1e-4, rtol=1e-4)
    assert jnp.allclose(prof_out2, ref_prof2, atol=1e-4, rtol=1e-4)

    print("KERNEL_OK")
</pallas_src>

<mosaic_0001>
module attributes {stable_mosaic.version = 11 : i64} {
  func.func @_teacher_kernel(%arg0: i32, %arg1: memref<8x8xf32, #tpu.memory_space<vmem>>, %arg2: memref<8x8xf32, #tpu.memory_space<vmem>>, %arg3: memref<8x32xf32, #tpu.memory_space<vmem>>, %arg4: memref<1x32xf32, #tpu.memory_space<vmem>>, %arg5: memref<32x8xf32, #tpu.memory_space<vmem>>, %arg6: memref<1x8xf32, #tpu.memory_space<vmem>>, %arg7: memref<8x32xf32, #tpu.memory_space<vmem>>, %arg8: memref<8x32xf32, #tpu.memory_space<vmem>>, %arg9: memref<1x32xf32, #tpu.memory_space<vmem>>, %arg10: memref<32x4xf32, #tpu.memory_space<vmem>>, %arg11: memref<1x4xf32, #tpu.memory_space<vmem>>, %arg12: memref<8x4xf32, #tpu.memory_space<vmem>>, %arg13: memref<8x8xf32, #tpu.memory_space<vmem>>) attributes {dimension_semantics = [#tpu.dimension_semantics<parallel>], iteration_bounds = array<i64: 4>, scalar_prefetch = 0 : i64, scratch_operands = 0 : i64, tpu.core_type = #tpu.core_type<tc>, window_params = [{transform_indices = @transform_0, window_bounds = array<i64: 8, 8>}, {transform_indices = @transform_1, window_bounds = array<i64: 8, 8>}, {pipeline_mode = #tpu.pipeline_mode<synchronous>, transform_indices = @transform_2, window_bounds = array<i64: 8, 32>}, {pipeline_mode = #tpu.pipeline_mode<synchronous>, transform_indices = @transform_3, window_bounds = array<i64: 1, 32>}, {pipeline_mode = #tpu.pipeline_mode<synchronous>, transform_indices = @transform_4, window_bounds = array<i64: 32, 8>}, {pipeline_mode = #tpu.pipeline_mode<synchronous>, transform_indices = @transform_5, window_bounds = array<i64: 1, 8>}, {pipeline_mode = #tpu.pipeline_mode<synchronous>, transform_indices = @transform_6, window_bounds = array<i64: 8, 32>}, {pipeline_mode = #tpu.pipeline_mode<synchronous>, transform_indices = @transform_7, window_bounds = array<i64: 8, 32>}, {pipeline_mode = #tpu.pipeline_mode<synchronous>, transform_indices = @transform_8, window_bounds = array<i64: 1, 32>}, {pipeline_mode = #tpu.pipeline_mode<synchronous>, transform_indices = @transform_9, window_bounds = array<i64: 32, 4>}, {pipeline_mode = #tpu.pipeline_mode<synchronous>, transform_indices = @transform_10, window_bounds = array<i64: 1, 4>}, {transform_indices = @transform_11, window_bounds = array<i64: 8, 4>}, {transform_indices = @transform_12, window_bounds = array<i64: 8, 8>}]} {
    %c0 = arith.constant 0 : index
    %c0_0 = arith.constant 0 : index
    %0 = vector.load %arg2[%c0, %c0_0] : memref<8x8xf32, #tpu.memory_space<vmem>>, vector<8x8xf32>
    %c0_1 = arith.constant 0 : index
    %c0_2 = arith.constant 0 : index
    %1 = vector.load %arg1[%c0_1, %c0_2] : memref<8x8xf32, #tpu.memory_space<vmem>>, vector<8x8xf32>
    %c0_3 = arith.constant 0 : index
    %c0_4 = arith.constant 0 : index
    %2 = vector.load %arg3[%c0_3, %c0_4] : memref<8x32xf32, #tpu.memory_space<vmem>>, vector<8x32xf32>
    %cst = arith.constant dense<0.000000e+00> : vector<8x32xf32>
    %3 = tpu.matmul %0, %2, %cst {dimension_numbers = #tpu.dot_dimension_numbers<[1], [0], [0], [1], [0, 0, 1, 1], [], []>} : vector<8x8xf32>, vector<8x32xf32>, vector<8x32xf32> -> vector<8x32xf32>
    %c0_5 = arith.constant 0 : index
    %c0_6 = arith.constant 0 : index
    %4 = vector.load %arg4[%c0_5, %c0_6] : memref<1x32xf32, #tpu.memory_space<vmem>>, vector<1x32xf32>
    %5 = vector.broadcast %4 : vector<1x32xf32> to vector<8x32xf32>
    %6 = arith.addf %3, %5 : vector<8x32xf32>
    %cst_7 = arith.constant 0.000000e+00 : f32
    %7 = vector.broadcast %cst_7 : f32 to vector<8x32xf32>
    %8 = arith.maximumf %6, %7 : vector<8x32xf32>
    %c0_8 = arith.constant 0 : index
    %c0_9 = arith.constant 0 : index
    %9 = vector.load %arg5[%c0_8, %c0_9] : memref<32x8xf32, #tpu.memory_space<vmem>>, vector<32x8xf32>
    %cst_10 = arith.constant dense<0.000000e+00> : vector<8x8xf32>
    %10 = tpu.matmul %8, %9, %cst_10 {dimension_numbers = #tpu.dot_dimension_numbers<[1], [0], [0], [1], [0, 0, 1, 1], [], []>} : vector<8x32xf32>, vector<32x8xf32>, vector<8x8xf32> -> vector<8x8xf32>
    %c0_11 = arith.constant 0 : index
    %c0_12 = arith.constant 0 : index
    %11 = vector.load %arg6[%c0_11, %c0_12] : memref<1x8xf32, #tpu.memory_space<vmem>>, vector<1x8xf32>
    %12 = vector.broadcast %11 : vector<1x8xf32> to vector<8x8xf32>
    %13 = arith.addf %10, %12 : vector<8x8xf32>
    %14 = arith.negf %13 : vector<8x8xf32>
    %15 = math.exp %14 : vector<8x8xf32>
    %cst_13 = arith.constant 1.000000e+00 : f32
    %16 = vector.broadcast %cst_13 : f32 to vector<8x8xf32>
    %17 = arith.addf %16, %15 : vector<8x8xf32>
    %18 = arith.divf %16, %17 : vector<8x8xf32>
    %19 = arith.mulf %0, %18 : vector<8x8xf32>
    %c0_14 = arith.constant 0 : index
    %c0_15 = arith.constant 0 : index
    %20 = vector.load %arg13[%c0_14, %c0_15] : memref<8x8xf32, #tpu.memory_space<vmem>>, vector<8x8xf32>
    tpu.vector_store %arg13[%c0_14, %c0_15], %19 {strides = array<i32>} : memref<8x8xf32, #tpu.memory_space<vmem>>, vector<8x8xf32>,
    %c0_16 = arith.constant 0 : index
    %c0_17 = arith.constant 0 : index
    %21 = vector.load %arg7[%c0_16, %c0_17] : memref<8x32xf32, #tpu.memory_space<vmem>>, vector<8x32xf32>
    %cst_18 = arith.constant dense<0.000000e+00> : vector<8x32xf32>
    %22 = tpu.matmul %1, %21, %cst_18 {dimension_numbers = #tpu.dot_dimension_numbers<[1], [0], [0], [1], [0, 0, 1, 1], [], []>} : vector<8x8xf32>, vector<8x32xf32>, vector<8x32xf32> -> vector<8x32xf32>
    %c0_19 = arith.constant 0 : index
    %c0_20 = arith.constant 0 : index
    %23 = vector.load %arg8[%c0_19, %c0_20] : memref<8x32xf32, #tpu.memory_space<vmem>>, vector<8x32xf32>
    %cst_21 = arith.constant dense<0.000000e+00> : vector<8x32xf32>
    %24 = tpu.matmul %19, %23, %cst_21 {dimension_numbers = #tpu.dot_dimension_numbers<[1], [0], [0], [1], [0, 0, 1, 1], [], []>} : vector<8x8xf32>, vector<8x32xf32>, vector<8x32xf32> -> vector<8x32xf32>
    %25 = arith.addf %22, %24 : vector<8x32xf32>
    %c0_22 = arith.constant 0 : index
    %c0_23 = arith.constant 0 : index
    %26 = vector.load %arg9[%c0_22, %c0_23] : memref<1x32xf32, #tpu.memory_space<vmem>>, vector<1x32xf32>
    %27 = vector.broadcast %26 : vector<1x32xf32> to vector<8x32xf32>
    %28 = arith.addf %25, %27 : vector<8x32xf32>
    %cst_24 = arith.constant 0.000000e+00 : f32
    %29 = vector.broadcast %cst_24 : f32 to vector<8x32xf32>
    %30 = arith.maximumf %28, %29 : vector<8x32xf32>
    %c0_25 = arith.constant 0 : index
    %c0_26 = arith.constant 0 : index
    %31 = vector.load %arg10[%c0_25, %c0_26] : memref<32x4xf32, #tpu.memory_space<vmem>>, vector<32x4xf32>
    %cst_27 = arith.constant dense<0.000000e+00> : vector<8x4xf32>
    %32 = tpu.matmul %30, %31, %cst_27 {dimension_numbers = #tpu.dot_dimension_numbers<[1], [0], [0], [1], [0, 0, 1, 1], [], []>} : vector<8x32xf32>, vector<32x4xf32>, vector<8x4xf32> -> vector<8x4xf32>
    %c0_28 = arith.constant 0 : index
    %c0_29 = arith.constant 0 : index
    %33 = vector.load %arg11[%c0_28, %c0_29] : memref<1x4xf32, #tpu.memory_space<vmem>>, vector<1x4xf32>
    %34 = vector.broadcast %33 : vector<1x4xf32> to vector<8x4xf32>
    %35 = arith.addf %32, %34 : vector<8x4xf32>
    %c0_30 = arith.constant 0 : index
    %c0_31 = arith.constant 0 : index
    %36 = vector.load %arg12[%c0_30, %c0_31] : memref<8x4xf32, #tpu.memory_space<vmem>>, vector<8x4xf32>
    tpu.vector_store %arg12[%c0_30, %c0_31], %35 {strides = array<i32>} : memref<8x4xf32, #tpu.memory_space<vmem>>, vector<8x4xf32>,
    return
  }
  func.func @transform_0(%arg0: i32) -> (i32, i32) {
    %c0_i32 = arith.constant 0 : i32
    %c0_i32_0 = arith.constant 0 : i32
    return %arg0, %c0_i32 : i32, i32
  }
  func.func @transform_1(%arg0: i32) -> (i32, i32) {
    %c0_i32 = arith.constant 0 : i32
    %c0_i32_0 = arith.constant 0 : i32
    return %arg0, %c0_i32 : i32, i32
  }
  func.func @transform_2(%arg0: i32) -> (i32, i32) {
    %c0_i32 = arith.constant 0 : i32
    %c0_i32_0 = arith.constant 0 : i32
    %c0_i32_1 = arith.constant 0 : i32
    return %c0_i32, %c0_i32_0 : i32, i32
  }
  func.func @transform_3(%arg0: i32) -> (i32, i32) {
    %c0_i32 = arith.constant 0 : i32
    %c0_i32_0 = arith.constant 0 : i32
    %c0_i32_1 = arith.constant 0 : i32
    return %c0_i32, %c0_i32_0 : i32, i32
  }
  func.func @transform_4(%arg0: i32) -> (i32, i32) {
    %c0_i32 = arith.constant 0 : i32
    %c0_i32_0 = arith.constant 0 : i32
    %c0_i32_1 = arith.constant 0 : i32
    return %c0_i32, %c0_i32_0 : i32, i32
  }
  func.func @transform_5(%arg0: i32) -> (i32, i32) {
    %c0_i32 = arith.constant 0 : i32
    %c0_i32_0 = arith.constant 0 : i32
    %c0_i32_1 = arith.constant 0 : i32
    return %c0_i32, %c0_i32_0 : i32, i32
  }
  func.func @transform_6(%arg0: i32) -> (i32, i32) {
    %c0_i32 = arith.constant 0 : i32
    %c0_i32_0 = arith.constant 0 : i32
    %c0_i32_1 = arith.constant 0 : i32
    return %c0_i32, %c0_i32_0 : i32, i32
  }
  func.func @transform_7(%arg0: i32) -> (i32, i32) {
    %c0_i32 = arith.constant 0 : i32
    %c0_i32_0 = arith.constant 0 : i32
    %c0_i32_1 = arith.constant 0 : i32
    return %c0_i32, %c0_i32_0 : i32, i32
  }
  func.func @transform_8(%arg0: i32) -> (i32, i32) {
    %c0_i32 = arith.constant 0 : i32
    %c0_i32_0 = arith.constant 0 : i32
    %c0_i32_1 = arith.constant 0 : i32
    return %c0_i32, %c0_i32_0 : i32, i32
  }
  func.func @transform_9(%arg0: i32) -> (i32, i32) {
    %c0_i32 = arith.constant 0 : i32
    %c0_i32_0 = arith.constant 0 : i32
    %c0_i32_1 = arith.constant 0 : i32
    return %c0_i32, %c0_i32_0 : i32, i32
  }
  func.func @transform_10(%arg0: i32) -> (i32, i32) {
    %c0_i32 = arith.constant 0 : i32
    %c0_i32_0 = arith.constant 0 : i32
    %c0_i32_1 = arith.constant 0 : i32
    return %c0_i32, %c0_i32_0 : i32, i32
  }
  func.func @transform_11(%arg0: i32) -> (i32, i32) {
    %c0_i32 = arith.constant 0 : i32
    %c0_i32_0 = arith.constant 0 : i32
    return %arg0, %c0_i32 : i32, i32
  }
  func.func @transform_12(%arg0: i32) -> (i32, i32) {
    %c0_i32 = arith.constant 0 : i32
    %c0_i32_0 = arith.constant 0 : i32
    return %arg0, %c0_i32 : i32, i32
  }
}

</mosaic_0001>

<llo_original>
// kernel: teacher_forward.1
$region0: #{teacher_forward.1}
  #allocation0 [shape = 'u32[]', space=smem, size = 0x4, offset = 0x4, fixed_abs, tag = 'smem constant byte address 0x4 - core index']
  #allocation1 [shape = 'u32[72,128]{1,0:T(1,128)}', space=vmem, size = 0x9000, scoped, tag = 'internal scratch']
  %s0 = inlined_call_operand.vmem [shape: f32[32,8], index: 0, kind: input, shape index: {}]
  %s1 = inlined_call_operand.vmem [shape: f32[32,8], index: 1, kind: input, shape index: {}]
  %s2 = inlined_call_operand.vmem [shape: f32[8,32], index: 2, kind: input, shape index: {}]
  %s3 = inlined_call_operand.vmem [shape: f32[1,32], index: 3, kind: input, shape index: {}]
  %s4 = inlined_call_operand.vmem [shape: f32[32,8], index: 4, kind: input, shape index: {}]
  %s5 = inlined_call_operand.vmem [shape: f32[1,8], index: 5, kind: input, shape index: {}]
  %s6 = inlined_call_operand.vmem [shape: f32[8,32], index: 6, kind: input, shape index: {}]
  %s7 = inlined_call_operand.vmem [shape: f32[8,32], index: 7, kind: input, shape index: {}]
  %s8 = inlined_call_operand.vmem [shape: f32[1,32], index: 8, kind: input, shape index: {}]
  %s9 = inlined_call_operand.vmem [shape: f32[32,4], index: 9, kind: input, shape index: {}]
  %s10 = inlined_call_operand.vmem [shape: f32[1,4], index: 10, kind: input, shape index: {}]
  %s11 = inlined_call_operand.vmem [shape: f32[32,4], index: 11, kind: output, shape index: {0}]
  %s12 = inlined_call_operand.vmem [shape: f32[32,8], index: 12, kind: output, shape index: {1}]
  %13 = xla_tuple %s11, %s12
  %s14 = sld [smem:[#allocation0]]
  $region85: #{teacher_forward.1} parent=0
    _
  %s16 = ssub.s32 1, %s14
  %s17 = scalar_select 0, %s16, %s14
  loop: start=0, step=1, limit=6
  $region2: #{teacher_forward.1} parent=0 // loop_pre_header
    _
  $region3: #{teacher_forward.1} parent=0 // loop_header
    %s19 = sphi 0, %s23
    %p20 = scmp.ge.s32.totalorder %s19, 6
    %s29 = sphi 0, %s31
    %s32 = sphi 0, %s29
    %s33 = sphi 0, %s32
    %s49 = sphi 0, %s33
    %s55 = sphi 0, %s57
    %s58 = sphi 0, %s55
    %s59 = sphi 0, %s58
    %s75 = sphi 0, %s59
    %s79 = sphi 0, %s79
    %s81 = sphi 0, %s79
    %s82 = sphi 0, %s81
    %s96 = sphi 0, %s82
    %s100 = sphi 0, %s100
    %s102 = sphi 0, %s100
    %s103 = sphi 0, %s102
    %s117 = sphi 0, %s103
    %s121 = sphi 0, %s121
    %s123 = sphi 0, %s121
    %s124 = sphi 0, %s123
    %s138 = sphi 0, %s124
    %s142 = sphi 0, %s142
    %s144 = sphi 0, %s142
    %s145 = sphi 0, %s144
    %s159 = sphi 0, %s145
    %s163 = sphi 0, %s163
    %s165 = sphi 0, %s163
    %s166 = sphi 0, %s165
    %s180 = sphi 0, %s166
    %s184 = sphi 0, %s184
    %s186 = sphi 0, %s184
    %s187 = sphi 0, %s186
    %s201 = sphi 0, %s187
    %s205 = sphi 0, %s205
    %s207 = sphi 0, %s205
    %s208 = sphi 0, %s207
    %s222 = sphi 0, %s208
    %s226 = sphi 0, %s226
    %s228 = sphi 0, %s226
    %s229 = sphi 0, %s228
    %s243 = sphi 0, %s229
    %s247 = sphi 0, %s247
    %s249 = sphi 0, %s247
    %s250 = sphi 0, %s249
    %s264 = sphi 0, %s250
    %s270 = sphi 0, %s272
    %s273 = sphi 0, %s270
    %s274 = sphi 0, %s273
    %s290 = sphi 0, %s274
    %s296 = sphi 0, %s298
    %s299 = sphi 0, %s296
    %s300 = sphi 0, %s299
    %s316 = sphi 0, %s300
  $region4: #{teacher_forward.1} parent=0 // loop_header_branch
    %22 = sbr.rel (%p20) target = $region8
  $region5: #{teacher_forward.1} parent=0 // loop_body
    %s24 = ssub.s32 %s19, 1
    %s25 = ssub.s32 %s19, 2
    %s26 = sadd.s32 %s19, 1
    %s27 = ssub.s32 %s19, %s26
    %p28 = scmp.eq.s32.totalorder %s27, 0
    %s30 = sadd.s32 %s29, 1
    %s31 = scalar_select %p28, %s29, %s30
    %p34 = pneg %p28
    %p35 = scmp.eq.s32.totalorder %s19, 3
    %p36 = por %p34, %p35
    %p37 = scmp.ne.s32.totalorder %s29, %s32
    %p38 = scmp.eq.s32.totalorder %s19, 0
    %p39 = por %p37, %p38
    %p40 = scmp.ne.s32.totalorder %s29, %s32
    %p41 = scmp.eq.s32.totalorder %s24, 3
    %p42 = por %p40, %p41
    %p43 = scmp.ne.s32.totalorder %s32, %s33
    %p44 = scmp.eq.s32.totalorder %s24, 0
    %p45 = por %p43, %p44
    %p46 = scmp.ne.s32.totalorder %s32, %s33
    %p47 = scmp.eq.s32.totalorder %s25, 3
    %p48 = por %p46, %p47
    %p50 = scmp.ne.s32.totalorder %s33, %s49
    %p51 = scmp.eq.s32.totalorder %s25, 0
    %p52 = por %p50, %p51
    %s53 = ssub.s32 %s19, %s26
    %p54 = scmp.eq.s32.totalorder %s53, 0
    %s56 = sadd.s32 %s55, 1
    %s57 = scalar_select %p54, %s55, %s56
    %p60 = pneg %p54
    %p61 = scmp.eq.s32.totalorder %s19, 3
    %p62 = por %p60, %p61
    %p63 = scmp.ne.s32.totalorder %s55, %s58
    %p64 = scmp.eq.s32.totalorder %s19, 0
    %p65 = por %p63, %p64
    %p66 = scmp.ne.s32.totalorder %s55, %s58
    %p67 = scmp.eq.s32.totalorder %s24, 3
    %p68 = por %p66, %p67
    %p69 = scmp.ne.s32.totalorder %s58, %s59
    %p70 = scmp.eq.s32.totalorder %s24, 0
    %p71 = por %p69, %p70
    %p72 = scmp.ne.s32.totalorder %s58, %s59
    %p73 = scmp.eq.s32.totalorder %s25, 3
    %p74 = por %p72, %p73
    %p76 = scmp.ne.s32.totalorder %s59, %s75
    %p77 = scmp.eq.s32.totalorder %s25, 0
    %p78 = por %p76, %p77
    %s80 = sadd.s32 %s79, 1
    %p83 = scmp.eq.s32.totalorder %s19, 3
    %p84 = scmp.ne.s32.totalorder %s79, %s81
    %p85 = scmp.eq.s32.totalorder %s19, 0
    %p86 = por %p84, %p85
    %p87 = scmp.ne.s32.totalorder %s79, %s81
    %p88 = scmp.eq.s32.totalorder %s24, 3
    %p89 = por %p87, %p88
    %p90 = scmp.ne.s32.totalorder %s81, %s82
    %p91 = scmp.eq.s32.totalorder %s24, 0
    %p92 = por %p90, %p91
    %p93 = scmp.ne.s32.totalorder %s81, %s82
    %p94 = scmp.eq.s32.totalorder %s25, 3
    %p95 = por %p93, %p94
    %p97 = scmp.ne.s32.totalorder %s82, %s96
    %p98 = scmp.eq.s32.totalorder %s25, 0
    %p99 = por %p97, %p98
    %s101 = sadd.s32 %s100, 1
    %p104 = scmp.eq.s32.totalorder %s19, 3
    %p105 = scmp.ne.s32.totalorder %s100, %s102
    %p106 = scmp.eq.s32.totalorder %s19, 0
    %p107 = por %p105, %p106
    %p108 = scmp.ne.s32.totalorder %s100, %s102
    %p109 = scmp.eq.s32.totalorder %s24, 3
    %p110 = por %p108, %p109
    %p111 = scmp.ne.s32.totalorder %s102, %s103
    %p112 = scmp.eq.s32.totalorder %s24, 0
    %p113 = por %p111, %p112
    %p114 = scmp.ne.s32.totalorder %s102, %s103
    %p115 = scmp.eq.s32.totalorder %s25, 3
    %p116 = por %p114, %p115
    %p118 = scmp.ne.s32.totalorder %s103, %s117
    %p119 = scmp.eq.s32.totalorder %s25, 0
    %p120 = por %p118, %p119
    %s122 = sadd.s32 %s121, 1
    %p125 = scmp.eq.s32.totalorder %s19, 3
    %p126 = scmp.ne.s32.totalorder %s121, %s123
    %p127 = scmp.eq.s32.totalorder %s19, 0
    %p128 = por %p126, %p127
    %p129 = scmp.ne.s32.totalorder %s121, %s123
    %p130 = scmp.eq.s32.totalorder %s24, 3
    %p131 = por %p129, %p130
    %p132 = scmp.ne.s32.totalorder %s123, %s124
    %p133 = scmp.eq.s32.totalorder %s24, 0
    %p134 = por %p132, %p133
    %p135 = scmp.ne.s32.totalorder %s123, %s124
    %p136 = scmp.eq.s32.totalorder %s25, 3
    %p137 = por %p135, %p136
    %p139 = scmp.ne.s32.totalorder %s124, %s138
    %p140 = scmp.eq.s32.totalorder %s25, 0
    %p141 = por %p139, %p140
    %s143 = sadd.s32 %s142, 1
    %p146 = scmp.eq.s32.totalorder %s19, 3
    %p147 = scmp.ne.s32.totalorder %s142, %s144
    %p148 = scmp.eq.s32.totalorder %s19, 0
    %p149 = por %p147, %p148
    %p150 = scmp.ne.s32.totalorder %s142, %s144
    %p151 = scmp.eq.s32.totalorder %s24, 3
    %p152 = por %p150, %p151
    %p153 = scmp.ne.s32.totalorder %s144, %s145
    %p154 = scmp.eq.s32.totalorder %s24, 0
    %p155 = por %p153, %p154
    %p156 = scmp.ne.s32.totalorder %s144, %s145
    %p157 = scmp.eq.s32.totalorder %s25, 3
    %p158 = por %p156, %p157
    %p160 = scmp.ne.s32.totalorder %s145, %s159
    %p161 = scmp.eq.s32.totalorder %s25, 0
    %p162 = por %p160, %p161
    %s164 = sadd.s32 %s163, 1
    %p167 = scmp.eq.s32.totalorder %s19, 3
    %p168 = scmp.ne.s32.totalorder %s163, %s165
    %p169 = scmp.eq.s32.totalorder %s19, 0
    %p170 = por %p168, %p169
    %p171 = scmp.ne.s32.totalorder %s163, %s165
    %p172 = scmp.eq.s32.totalorder %s24, 3
    %p173 = por %p171, %p172
    %p174 = scmp.ne.s32.totalorder %s165, %s166
    %p175 = scmp.eq.s32.totalorder %s24, 0
    %p176 = por %p174, %p175
    %p177 = scmp.ne.s32.totalorder %s165, %s166
    %p178 = scmp.eq.s32.totalorder %s25, 3
    %p179 = por %p177, %p178
    %p181 = scmp.ne.s32.totalorder %s166, %s180
    %p182 = scmp.eq.s32.totalorder %s25, 0
    %p183 = por %p181, %p182
    %s185 = sadd.s32 %s184, 1
    %p188 = scmp.eq.s32.totalorder %s19, 3
    %p189 = scmp.ne.s32.totalorder %s184, %s186
    %p190 = scmp.eq.s32.totalorder %s19, 0
    %p191 = por %p189, %p190
    %p192 = scmp.ne.s32.totalorder %s184, %s186
    %p193 = scmp.eq.s32.totalorder %s24, 3
    %p194 = por %p192, %p193
    %p195 = scmp.ne.s32.totalorder %s186, %s187
    %p196 = scmp.eq.s32.totalorder %s24, 0
    %p197 = por %p195, %p196
    %p198 = scmp.ne.s32.totalorder %s186, %s187
    %p199 = scmp.eq.s32.totalorder %s25, 3
    %p200 = por %p198, %p199
    %p202 = scmp.ne.s32.totalorder %s187, %s201
    %p203 = scmp.eq.s32.totalorder %s25, 0
    %p204 = por %p202, %p203
    %s206 = sadd.s32 %s205, 1
    %p209 = scmp.eq.s32.totalorder %s19, 3
    %p210 = scmp.ne.s32.totalorder %s205, %s207
    %p211 = scmp.eq.s32.totalorder %s19, 0
    %p212 = por %p210, %p211
    %p213 = scmp.ne.s32.totalorder %s205, %s207
    %p214 = scmp.eq.s32.totalorder %s24, 3
    %p215 = por %p213, %p214
    %p216 = scmp.ne.s32.totalorder %s207, %s208
    %p217 = scmp.eq.s32.totalorder %s24, 0
    %p218 = por %p216, %p217
    %p219 = scmp.ne.s32.totalorder %s207, %s208
    %p220 = scmp.eq.s32.totalorder %s25, 3
    %p221 = por %p219, %p220
    %p223 = scmp.ne.s32.totalorder %s208, %s222
    %p224 = scmp.eq.s32.totalorder %s25, 0
    %p225 = por %p223, %p224
    %s227 = sadd.s32 %s226, 1
    %p230 = scmp.eq.s32.totalorder %s19, 3
    %p231 = scmp.ne.s32.totalorder %s226, %s228
    %p232 = scmp.eq.s32.totalorder %s19, 0
    %p233 = por %p231, %p232
    %p234 = scmp.ne.s32.totalorder %s226, %s228
    %p235 = scmp.eq.s32.totalorder %s24, 3
    %p236 = por %p234, %p235
    %p237 = scmp.ne.s32.totalorder %s228, %s229
    %p238 = scmp.eq.s32.totalorder %s24, 0
    %p239 = por %p237, %p238
    %p240 = scmp.ne.s32.totalorder %s228, %s229
    %p241 = scmp.eq.s32.totalorder %s25, 3
    %p242 = por %p240, %p241
    %p244 = scmp.ne.s32.totalorder %s229, %s243
    %p245 = scmp.eq.s32.totalorder %s25, 0
    %p246 = por %p244, %p245
    %s248 = sadd.s32 %s247, 1
    %p251 = scmp.eq.s32.totalorder %s19, 3
    %p252 = scmp.ne.s32.totalorder %s247, %s249
    %p253 = scmp.eq.s32.totalorder %s19, 0
    %p254 = por %p252, %p253
    %p255 = scmp.ne.s32.totalorder %s247, %s249
    %p256 = scmp.eq.s32.totalorder %s24, 3
    %p257 = por %p255, %p256
    %p258 = scmp.ne.s32.totalorder %s249, %s250
    %p259 = scmp.eq.s32.totalorder %s24, 0
    %p260 = por %p258, %p259
    %p261 = scmp.ne.s32.totalorder %s249, %s250
    %p262 = scmp.eq.s32.totalorder %s25, 3
    %p263 = por %p261, %p262
    %p265 = scmp.ne.s32.totalorder %s250, %s264
    %p266 = scmp.eq.s32.totalorder %s25, 0
    %p267 = por %p265, %p266
    %s268 = ssub.s32 %s19, %s26
    %p269 = scmp.eq.s32.totalorder %s268, 0
    %s271 = sadd.s32 %s270, 1
    %s272 = scalar_select %p269, %s270, %s271
    %p275 = pneg %p269
    %p276 = scmp.eq.s32.totalorder %s19, 3
    %p277 = por %p275, %p276
    %p278 = scmp.ne.s32.totalorder %s270, %s273
    %p279 = scmp.eq.s32.totalorder %s19, 0
    %p280 = por %p278, %p279
    %p281 = scmp.ne.s32.totalorder %s270, %s273
    %p282 = scmp.eq.s32.totalorder %s24, 3
    %p283 = por %p281, %p282
    %p284 = scmp.ne.s32.totalorder %s273, %s274
    %p285 = scmp.eq.s32.totalorder %s24, 0
    %p286 = por %p284, %p285
    %p287 = scmp.ne.s32.totalorder %s273, %s274
    %p288 = scmp.eq.s32.totalorder %s25, 3
    %p289 = por %p287, %p288
    %p291 = scmp.ne.s32.totalorder %s274, %s290
    %p292 = scmp.eq.s32.totalorder %s25, 0
    %p293 = por %p291, %p292
    %s294 = ssub.s32 %s19, %s26
    %p295 = scmp.eq.s32.totalorder %s294, 0
    %s297 = sadd.s32 %s296, 1
    %s298 = scalar_select %p295, %s296, %s297
    %p301 = pneg %p295
    %p302 = scmp.eq.s32.totalorder %s19, 3
    %p303 = por %p301, %p302
    %p304 = scmp.ne.s32.totalorder %s296, %s299
    %p305 = scmp.eq.s32.totalorder %s19, 0
    %p306 = por %p304, %p305
    %p307 = scmp.ne.s32.totalorder %s296, %s299
    %p308 = scmp.eq.s32.totalorder %s24, 3
    %p309 = por %p307, %p308
    %p310 = scmp.ne.s32.totalorder %s299, %s300
    %p311 = scmp.eq.s32.totalorder %s24, 0
    %p312 = por %p310, %p311
    %p313 = scmp.ne.s32.totalorder %s299, %s300
    %p314 = scmp.eq.s32.totalorder %s25, 3
    %p315 = por %p313, %p314
    %p317 = scmp.ne.s32.totalorder %s300, %s316
    %p318 = scmp.eq.s32.totalorder %s25, 0
    %p319 = por %p317, %p318
    %p320 = scmp.le.s32.totalorder 1, %s19
    %p321 = scmp.lt.s32.totalorder %s19, 5
    %p322 = pnand %p320, %p321
    %p323 = pneg %p322
    // Predicated region
    $region9: #{teacher_forward.1} parent=5 // pred_check
      _
    $region10: #{teacher_forward.1} parent=5 // pred_check_branch
      %325 = sbr.rel (%p322) target = $region12
    $region11: #{teacher_forward.1} parent=5 // pred_region
      %s326 = ssub.s32 %s19, 1
      // Predicated region
      $region13: #{teacher_forward.1} parent=11 // pred_check
        %p327 = pneg %p92
      $region14: #{teacher_forward.1} parent=11 // pred_check_branch
        %329 = sbr.rel (%p327) target = $region16
      $region15: #{teacher_forward.1} parent=11 // pred_region
        _
      $region16: #{teacher_forward.1} parent=11 // pred_fallthru
        _
      // Predicated region
      $region17: #{teacher_forward.1} parent=11 // pred_check
        %p330 = pneg %p113
      $region18: #{teacher_forward.1} parent=11 // pred_check_branch
        %332 = sbr.rel (%p330) target = $region20
      $region19: #{teacher_forward.1} parent=11 // pred_region
        _
      $region20: #{teacher_forward.1} parent=11 // pred_fallthru
        _
      // Predicated region
      $region21: #{teacher_forward.1} parent=11 // pred_check
        %p333 = pneg %p134
      $region22: #{teacher_forward.1} parent=11 // pred_check_branch
        %335 = sbr.rel (%p333) target = $region24
      $region23: #{teacher_forward.1} parent=11 // pred_region
        _
      $region24: #{teacher_forward.1} parent=11 // pred_fallthru
        _
      // Predicated region
      $region25: #{teacher_forward.1} parent=11 // pred_check
        %p336 = pneg %p155
      $region26: #{teacher_forward.1} parent=11 // pred_check_branch
        %338 = sbr.rel (%p336) target = $region28
      $region27: #{teacher_forward.1} parent=11 // pred_region
        _
      $region28: #{teacher_forward.1} parent=11 // pred_fallthru
        _
      // Predicated region
      $region29: #{teacher_forward.1} parent=11 // pred_check
        %p339 = pneg %p176
      $region30: #{teacher_forward.1} parent=11 // pred_check_branch
        %341 = sbr.rel (%p339) target = $region32
      $region31: #{teacher_forward.1} parent=11 // pred_region
        _
      $region32: #{teacher_forward.1} parent=11 // pred_fallthru
        _
      // Predicated region
      $region33: #{teacher_forward.1} parent=11 // pred_check
        %p342 = pneg %p197
      $region34: #{teacher_forward.1} parent=11 // pred_check_branch
        %344 = sbr.rel (%p342) target = $region36
      $region35: #{teacher_forward.1} parent=11 // pred_region
        _
      $region36: #{teacher_forward.1} parent=11 // pred_fallthru
        _
      // Predicated region
      $region37: #{teacher_forward.1} parent=11 // pred_check
        %p345 = pneg %p218
      $region38: #{teacher_forward.1} parent=11 // pred_check_branch
        %347 = sbr.rel (%p345) target = $region40
      $region39: #{teacher_forward.1} parent=11 // pred_region
        _
      $region40: #{teacher_forward.1} parent=11 // pred_fallthru
        _
      // Predicated region
      $region41: #{teacher_forward.1} parent=11 // pred_check
        %p348 = pneg %p239
      $region42: #{teacher_forward.1} parent=11 // pred_check_branch
        %350 = sbr.rel (%p348) target = $region44
      $region43: #{teacher_forward.1} parent=11 // pred_region
        _
      $region44: #{teacher_forward.1} parent=11 // pred_fallthru
        _
      // Predicated region
      $region45: #{teacher_forward.1} parent=11 // pred_check
        %p351 = pneg %p260
      $region46: #{teacher_forward.1} parent=11 // pred_check_branch
        %353 = sbr.rel (%p351) target = $region48
      $region47: #{teacher_forward.1} parent=11 // pred_region
        _
      $region48: #{teacher_forward.1} parent=11 // pred_fallthru
        _
    $region12: #{teacher_forward.1} parent=5 // pred_fallthru
      _
    %p354 = scmp.lt.s32.totalorder %s19, 4
    // Predicated region
    $region49: #{teacher_forward.1} parent=5 // pred_check
      %p355 = pneg %p354
    $region50: #{teacher_forward.1} parent=5 // pred_check_branch
      %357 = sbr.rel (%p355) target = $region52
    $region51: #{teacher_forward.1} parent=5 // pred_region
      // Predicated region
      $region53: #{teacher_forward.1} parent=51 // pred_check
        %p358 = pneg %p39
      $region54: #{teacher_forward.1} parent=51 // pred_check_branch
        %360 = sbr.rel (%p358) target = $region56
      $region55: #{teacher_forward.1} parent=51 // pred_region
        %p361 = scmp.lt.s32.totalorder %s19, 3
        %s362 = scalar_select %p361, %s19, 3
        %s363 = smul.addr %s362, 8
        %s364 = scalar_lea.vmem %s0, %s363
      $region56: #{teacher_forward.1} parent=51 // pred_fallthru
        _
      // Predicated region
      $region57: #{teacher_forward.1} parent=51 // pred_check
        %p365 = pneg %p65
      $region58: #{teacher_forward.1} parent=51 // pred_check_branch
        %367 = sbr.rel (%p365) target = $region60
      $region59: #{teacher_forward.1} parent=51 // pred_region
        %p368 = scmp.lt.s32.totalorder %s19, 3
        %s369 = scalar_select %p368, %s19, 3
        %s370 = smul.addr %s369, 8
        %s371 = scalar_lea.vmem %s1, %s370
      $region60: #{teacher_forward.1} parent=51 // pred_fallthru
        _
    $region52: #{teacher_forward.1} parent=5 // pred_fallthru
      _
    %p372 = scmp.le.s32.totalorder 1, %s19
    %p373 = scmp.lt.s32.totalorder %s19, 5
    %p374 = pnand %p372, %p373
    %p375 = pneg %p374
    // Predicated region
    $region61: #{teacher_forward.1} parent=5 // pred_check
      _
    $region62: #{teacher_forward.1} parent=5 // pred_check_branch
      %377 = sbr.rel (%p374) target = $region64
    $region63: #{teacher_forward.1} parent=5 // pred_region
      %s378 = ssub.s32 %s19, 1
      %p379 = scmp.lt.s32.totalorder %s24, 3
      %s380 = scalar_select %p379, %s24, 3
      %s381 = smul.addr %s380, 8
      %s382 = scalar_lea.vmem %s0, %s381
      %p383 = pneg %p45
      %p384 = pneg %p42
      %p385 = scmp.lt.s32.totalorder %s24, 3
      %s386 = scalar_select %p385, %s24, 3
      %s387 = smul.addr %s386, 8
      %s388 = scalar_lea.vmem %s1, %s387
      %p389 = pneg %p71
      %p390 = pneg %p68
      %p391 = pneg %p92
      %p392 = pneg %p89
      %p393 = pneg %p113
      %p394 = pneg %p110
      %p395 = pneg %p134
      %p396 = pneg %p131
      %p397 = pneg %p155
      %p398 = pneg %p152
      %p399 = pneg %p176
      %p400 = pneg %p173
      %p401 = pneg %p197
      %p402 = pneg %p194
      %p403 = pneg %p218
      %p404 = pneg %p215
      %p405 = pneg %p239
      %p406 = pneg %p236
      %p407 = pneg %p260
      %p408 = pneg %p257
      %p409 = pneg %p286
      %p410 = pneg %p283
      %p411 = scmp.lt.s32.totalorder %s24, 3
      %s412 = scalar_select %p411, %s24, 3
      %s413 = smul.addr %s412, 8
      %s414 = scalar_lea.vmem %s11, %s413
      %p415 = pneg %p312
      %p416 = pneg %p309
      %p417 = scmp.lt.s32.totalorder %s24, 3
      %s418 = scalar_select %p417, %s24, 3
      %s419 = smul.addr %s418, 8
      %s420 = scalar_lea.vmem %s12, %s419
      %p421 = scmp.lt.s32.totalorder %s24, 3
      %s422 = scalar_select %p421, %s24, 3
      %s423 = smul.addr %s422, 8
      %s424 = scalar_lea.vmem %s0, %s423
      %p425 = scmp.lt.s32.totalorder %s24, 3
      %s426 = scalar_select %p425, %s24, 3
      %s427 = smul.addr %s426, 8
      %s428 = scalar_lea.vmem %s1, %s427
      %p429 = scmp.lt.s32.totalorder %s24, 3
      %s430 = scalar_select %p429, %s24, 3
      %s431 = smul.addr %s430, 8
      %s432 = scalar_lea.vmem %s11, %s431
      %p433 = scmp.lt.s32.totalorder %s24, 3
      %s434 = scalar_select %p433, %s24, 3
      %s435 = smul.addr %s434, 8
      %s436 = scalar_lea.vmem %s12, %s435
      %v437 = vld [vmem:[%s428] sm:$0xff]
      %v438 = vld [vmem:[%s424] sm:$0xff]
      %v439 = vld [vmem:[%s2] sm:$0xff]
      %v440 = vld [vmem:[%s3] sm:$0x1]
      %v442 = vperm.slane %v440, 0
      %vm444 = vcmask 64512
      %v446 = vsel %vm444, %v437, 0
      %448 = vmatpush.msra.mxu0 0.0
      %449 = vmatpush.msra.mxu0 0.0
      %450 = vmatpush.msra.mxu0 0.0
      %451 = vmatpush.msra.mxu0 0.0
      %452 = vmatpush.msra.mxu0 0.0
      %453 = vmatpush.msra.mxu0 0.0
      %454 = vmatpush.msra.mxu0 0.0
      %455 = vmatpush.msra.mxu0 0.0
      %456 = vmatpush.msra.mxu0 0.0
      %457 = vmatpush.msra.mxu0 0.0
      %458 = vmatpush.msra.mxu0 0.0
      %459 = vmatpush.msra.mxu0 0.0
      %460 = vmatpush.msra.mxu0 0.0
      %461 = vmatpush.msra.mxu0 0.0
      %462 = vmatpush.msra.mxu0 0.0
      %463 = vmatpush.msra.mxu0 %v439
      %464 = vmatmul.f32.gmra.mxu0 %v446
      %v465 = vpop.f32.mrf.mxu0
      %v466 = vadd.f32 %v442, %v465
      %467 = vdwg.mxu0
      %v468 = vmax.f32 %v466, 0.0
      %v469 = vld [vmem:[%s4] sm:$0xff]
      %v470 = vld [vmem:[%s4 + $0x8] sm:$0xff]
      %v471 = vld [vmem:[%s4 + $0x10] sm:$0xff]
      %v472 = vld [vmem:[%s4 + $0x18] sm:$0xff]
      %v473 = vld [vmem:[%s5] sm:$0x1]
      %v475 = vperm.slane %v473, 0
      %vm477 = vcmask 261120
      %v479 = vsel %vm477, %v468, 0
      %481 = vmatpush.msra.mxu0 0.0
      %482 = vmatpush.msra.mxu0 0.0
      %483 = vmatpush.msra.mxu0 0.0
      %484 = vmatpush.msra.mxu0 0.0
      %485 = vmatpush.msra.mxu0 0.0
      %486 = vmatpush.msra.mxu0 0.0
      %487 = vmatpush.msra.mxu0 0.0
      %488 = vmatpush.msra.mxu0 0.0
      %489 = vmatpush.msra.mxu0 0.0
      %490 = vmatpush.msra.mxu0 0.0
      %491 = vmatpush.msra.mxu0 0.0
      %492 = vmatpush.msra.mxu0 0.0
      %493 = vmatpush.msra.mxu0 %v472
      %494 = vmatpush.msra.mxu0 %v471
      %495 = vmatpush.msra.mxu0 %v470
      %496 = vmatpush.msra.mxu0 %v469
      %497 = vmatmul.f32.gmra.mxu0 %v479
      %v498 = vpop.f32.mrf.mxu0
      %v499 = vadd.f32 %v475, %v498
      %500 = vdwg.mxu0
      %v501 = vxor.u32 %v499, 2147483648
      %v502 = vmul.f32 %v501, 1.442695
      %v503 = vpow.pop %v502
      %v504 = vadd.f32 %v503, 1.0
      %v505 = vrcp.pop %v504
      %v506 = vmul.f32 %v504, %v505
      %v507 = vsub.f32 1.0, %v506
      %v508 = vmul.f32 %v505, %v507
      %v509 = vadd.f32 %v505, %v508
      %vm510 = vweird.f32 %v504
      %vm511 = vweird.f32 %v505
      %vm512 = vmor %vm510, %vm511
      %v513 = vsel %vm512, %v505, %v509
      %v514 = vand.u32 2147483647, %v504
      %vm515 = vcmp.eq.f32.partialorder %v514, 8.507059e+37
      %v516 = vand.u32 %v504, 2147483648
      %v517 = vor.u32 1.1754944e-38, %v516
      %v518 = vsel %vm515, %v517, %v513
      %v519 = vmul.f32 1.0, %v518
      %v520 = vmul.f32 %v437, %v519
      %521 = vst.msk [vmem:[%s436] sm:$0xff] %vm444, %v520
      %v522 = vld [vmem:[%s6] sm:$0xff]
      %v523 = vld [vmem:[%s7] sm:$0xff]
      %v525 = vsel %vm444, %v520, 0
      %527 = vmatpush.msra.mxu0 0.0
      %528 = vmatpush.msra.mxu0 0.0
      %529 = vmatpush.msra.mxu0 0.0
      %530 = vmatpush.msra.mxu0 0.0
      %531 = vmatpush.msra.mxu0 0.0
      %532 = vmatpush.msra.mxu0 0.0
      %533 = vmatpush.msra.mxu0 0.0
      %534 = vmatpush.msra.mxu0 0.0
      %535 = vmatpush.msra.mxu0 0.0
      %536 = vmatpush.msra.mxu0 0.0
      %537 = vmatpush.msra.mxu0 0.0
      %538 = vmatpush.msra.mxu0 0.0
      %539 = vmatpush.msra.mxu0 0.0
      %540 = vmatpush.msra.mxu0 0.0
      %541 = vmatpush.msra.mxu0 0.0
      %542 = vmatpush.msra.mxu0 %v523
      %543 = vmatmul.f32.gmra.mxu0 %v525
      %v544 = vpop.f32.mrf.mxu0
      %v545 = vadd.f32 0.0, %v544
      %546 = vdwg.mxu0
      %v548 = vsel %vm444, %v438, 0
      %550 = vmatpush.msra.mxu0 0.0
      %551 = vmatpush.msra.mxu0 0.0
      %552 = vmatpush.msra.mxu0 0.0
      %553 = vmatpush.msra.mxu0 0.0
      %554 = vmatpush.msra.mxu0 0.0
      %555 = vmatpush.msra.mxu0 0.0
      %556 = vmatpush.msra.mxu0 0.0
      %557 = vmatpush.msra.mxu0 0.0
      %558 = vmatpush.msra.mxu0 0.0
      %559 = vmatpush.msra.mxu0 0.0
      %560 = vmatpush.msra.mxu0 0.0
      %561 = vmatpush.msra.mxu0 0.0
      %562 = vmatpush.msra.mxu0 0.0
      %563 = vmatpush.msra.mxu0 0.0
      %564 = vmatpush.msra.mxu0 0.0
      %565 = vmatpush.msra.mxu0 %v522
      %566 = vmatmul.f32.gmra.mxu0 %v548
      %v567 = vpop.f32.mrf.mxu0
      %v568 = vadd.f32 %v545, %v567
      %569 = vdwg.mxu0
      %v570 = vld [vmem:[%s8] sm:$0x1]
      %v572 = vperm.slane %v570, 0
      %v574 = vadd.f32 %v568, %v572
      %v575 = vmax.f32 %v574, 0.0
      %v576 = vld [vmem:[%s9] sm:$0xff]
      %v577 = vld [vmem:[%s9 + $0x8] sm:$0xff]
      %v578 = vld [vmem:[%s9 + $0x10] sm:$0xff]
      %v579 = vld [vmem:[%s9 + $0x18] sm:$0xff]
      %v580 = vld [vmem:[%s10] sm:$0x1]
      %v582 = vperm.slane %v580, 0
      %v585 = vsel %vm477, %v575, 0
      %587 = vmatpush.msra.mxu0 0.0
      %588 = vmatpush.msra.mxu0 0.0
      %589 = vmatpush.msra.mxu0 0.0
      %590 = vmatpush.msra.mxu0 0.0
      %591 = vmatpush.msra.mxu0 0.0
      %592 = vmatpush.msra.mxu0 0.0
      %593 = vmatpush.msra.mxu0 0.0
      %594 = vmatpush.msra.mxu0 0.0
      %595 = vmatpush.msra.mxu0 0.0
      %596 = vmatpush.msra.mxu0 0.0
      %597 = vmatpush.msra.mxu0 0.0
      %598 = vmatpush.msra.mxu0 0.0
      %599 = vmatpush.msra.mxu0 %v579
      %600 = vmatpush.msra.mxu0 %v578
      %601 = vmatpush.msra.mxu0 %v577
      %602 = vmatpush.msra.mxu0 %v576
      %603 = vmatmul.f32.gmra.mxu0 %v585
      %v604 = vpop.f32.mrf.mxu0
      %v605 = vadd.f32 %v582, %v604
      %606 = vdwg.mxu0
      %vm607 = vcmask 31744
      %608 = vst.msk [vmem:[%s432] sm:$0xff] %vm607, %v605
      %p609 = scmp.lt.s32.totalorder %s24, 3
      %s610 = scalar_select %p609, %s24, 3
      %s611 = smul.addr %s610, 8
      %s612 = scalar_lea.vmem %s11, %s611
      %p613 = scmp.lt.s32.totalorder %s24, 3
      %s614 = scalar_select %p613, %s24, 3
      %s615 = smul.addr %s614, 8
      %s616 = scalar_lea.vmem %s12, %s615
      // Predicated region
      $region65: #{teacher_forward.1} parent=63 // pred_check
        %p617 = pneg %p283
      $region66: #{teacher_forward.1} parent=63 // pred_check_branch
        %619 = sbr.rel (%p617) target = $region68
      $region67: #{teacher_forward.1} parent=63 // pred_region
        _
      $region68: #{teacher_forward.1} parent=63 // pred_fallthru
        _
      // Predicated region
      $region69: #{teacher_forward.1} parent=63 // pred_check
        %p620 = pneg %p309
      $region70: #{teacher_forward.1} parent=63 // pred_check_branch
        %622 = sbr.rel (%p620) target = $region72
      $region71: #{teacher_forward.1} parent=63 // pred_region
        _
      $region72: #{teacher_forward.1} parent=63 // pred_fallthru
        _
    $region64: #{teacher_forward.1} parent=5 // pred_fallthru
      _
    %p623 = scmp.le.s32.totalorder 2, %s19
    // Predicated region
    $region73: #{teacher_forward.1} parent=5 // pred_check
      %p624 = pneg %p623
    $region74: #{teacher_forward.1} parent=5 // pred_check_branch
      %626 = sbr.rel (%p624) target = $region76
    $region75: #{teacher_forward.1} parent=5 // pred_region
      %s627 = ssub.s32 %s19, 2
      // Predicated region
      $region77: #{teacher_forward.1} parent=75 // pred_check
        %p628 = pneg %p289
      $region78: #{teacher_forward.1} parent=75 // pred_check_branch
        %630 = sbr.rel (%p628) target = $region80
      $region79: #{teacher_forward.1} parent=75 // pred_region
        %p631 = scmp.lt.s32.totalorder %s25, 3
        %s632 = scalar_select %p631, %s25, 3
        %s633 = smul.addr %s632, 8
        %s634 = scalar_lea.vmem %s11, %s633
      $region80: #{teacher_forward.1} parent=75 // pred_fallthru
        _
      // Predicated region
      $region81: #{teacher_forward.1} parent=75 // pred_check
        %p635 = pneg %p315
      $region82: #{teacher_forward.1} parent=75 // pred_check_branch
        %637 = sbr.rel (%p635) target = $region84
      $region83: #{teacher_forward.1} parent=75 // pred_region
        %p638 = scmp.lt.s32.totalorder %s25, 3
        %s639 = scalar_select %p638, %s25, 3
        %s640 = smul.addr %s639, 8
        %s641 = scalar_lea.vmem %s12, %s640
      $region84: #{teacher_forward.1} parent=75 // pred_fallthru
        _
    $region76: #{teacher_forward.1} parent=5 // pred_fallthru
      _
  $region6: #{teacher_forward.1} parent=0 // loop_footer
    %s23 = sadd.s32 1, %s19
  $region7: #{teacher_forward.1} parent=0 // loop_footer_branch
    %18 = sbr.rel target = $region3
  $region8: #{teacher_forward.1} parent=0 // loop_exit
    _

</llo_original>
